<compile_context>
chip_gen: v5e
topology: v5e:2x2
jax: 0.10.0
libtpu: 0.0.40
codegen_flags: <defaults>
</compile_context>

<pallas_src>
import functools

import jax
import jax.numpy as jnp
from jax.experimental import pallas as pl
from jax.experimental.pallas import tpu as pltpu


# ---------------------------------------------------------------------------
# Helpers
# ---------------------------------------------------------------------------
def _round_up(x, m):
    return ((x + m - 1) // m) * m


def _pad2(a, rows, cols):
    return jnp.pad(a, ((0, rows - a.shape[0]), (0, cols - a.shape[1])))


def _default_act_dtype():
    """bf16 epilogue on chips with a bf16 VPU (v6e/v7x); f32 elsewhere (v5e)."""
    try:
        kind = jax.devices()[0].device_kind.lower()
    except Exception:
        return jnp.float32
    return jnp.bfloat16 if ("v6" in kind or "v7" in kind) else jnp.float32


def _choose_batch_tiling(B, block_b):
    """Balanced batch tiles (padding < 8 rows per tile); keep >= 2 tiles when
    B is large enough so the 'parallel' axis can use both v7x TensorCores."""
    num_tiles = max(1, pl.cdiv(B, block_b))
    if num_tiles == 1 and B >= 512:
        num_tiles = 2                       # free on v5e/v6e, ~2x on v7x
    blk = _round_up(pl.cdiv(B, num_tiles), 8)
    return blk, num_tiles, num_tiles * blk


# ---------------------------------------------------------------------------
# Kernel
# ---------------------------------------------------------------------------
def _mlp_kernel(x_ref, w1_ref, b1_ref, w2_ref, b2_ref, w3_ref, b3_ref, o_ref,
                *, act_dtype, apply_sigmoid):
    f32 = jnp.float32
    # Layer 1: MXU matmul (f32 accumulate); bias + ReLU in act_dtype
    # (bf16 on v6e/v7x halves vreg/VMEM traffic; f32 on v5e: no bf16 VPU).
    h = jnp.dot(x_ref[...], w1_ref[...], preferred_element_type=f32)
    h = jnp.maximum(h.astype(act_dtype) + b1_ref[...], 0)
    # Layer 2 (the astype is a no-op when act_dtype == weight dtype).
    h = jnp.dot(h.astype(w2_ref.dtype), w2_ref[...], preferred_element_type=f32)
    h = jnp.maximum(h.astype(act_dtype) + b2_ref[...], 0)
    # Layer 3: Linear only (no activation for discrim=False).
    y = jnp.dot(h.astype(w3_ref.dtype), w3_ref[...], preferred_element_type=f32)
    y = y + b3_ref[...]
    if apply_sigmoid:                        # discrim=True path of the module
        y = jax.nn.sigmoid(y)
    o_ref[...] = y.astype(o_ref.dtype)
    # TODO(synk): dropout (dropout != -1) is a stochastic training-time op;
    # the reference config uses dropout=-1 so it is intentionally omitted.


# ---------------------------------------------------------------------------
# One-time parameter preparation (hoisted out of the per-call path)
# ---------------------------------------------------------------------------
def prepare_mlp_params(params, *, mxu_dtype=jnp.bfloat16, act_dtype=None):
    """Pad every feature dim to a multiple of 128 and cast weights to the MXU
    dtype ONCE.  Weights are stored (in_features, out_features), i.e.
    transposed vs. torch, so the kernel computes y = x @ W + b directly."""
    if act_dtype is None:
        act_dtype = _default_act_dtype()
    (w1, b1), (w2, b2), (w3, b3) = params
    d_in, h1 = w1.shape
    h2 = w2.shape[1]
    d_out = w3.shape[1]
    d_in_p, h1_p, h2_p, d_out_p = (_round_up(d, 128)
                                   for d in (d_in, h1, h2, d_out))
    prepared = dict(
        w1=_pad2(w1, d_in_p, h1_p).astype(mxu_dtype),
        b1=_pad2(b1.reshape(1, -1), 1, h1_p).astype(act_dtype),
        w2=_pad2(w2, h1_p, h2_p).astype(mxu_dtype),
        b2=_pad2(b2.reshape(1, -1), 1, h2_p).astype(act_dtype),
        w3=_pad2(w3, h2_p, d_out_p).astype(mxu_dtype),
        b3=_pad2(b3.reshape(1, -1), 1, d_out_p).astype(jnp.float32),
    )
    meta = dict(d_out=d_out, act_dtype=act_dtype)
    return prepared, meta


# ---------------------------------------------------------------------------
# Forward pass
# ---------------------------------------------------------------------------
@functools.partial(
    jax.jit,
    static_argnames=("d_out", "block_b", "act_dtype", "apply_sigmoid",
                     "single_buffer_weights"),
)
def _mlp_forward_impl(x, w1, b1, w2, b2, w3, b3, *, d_out, block_b, act_dtype,
                      apply_sigmoid, single_buffer_weights):
    B, _ = x.shape
    d_in_p, h1_p = w1.shape
    h2_p = w2.shape[1]
    d_out_p = w3.shape[1]

    blk, num_tiles, B_p = _choose_batch_tiling(B, block_b)

    # Pad + cast x inside the same jit as the pallas_call so XLA fuses it into
    # one pass.  Zero padding is exact through Linear+ReLU; sliced off below.
    xp = _pad2(x, B_p, d_in_p).astype(w1.dtype)

    def resident(shape):
        # Whole-array block with a constant index across the batch grid
        # (resident weights).  Double buffering it is pure VMEM waste.
        if single_buffer_weights:
            return pl.BlockSpec(shape, lambda *_: (0,) * len(shape),
                                pipeline_mode=pl.Buffered(1))
        return pl.BlockSpec(shape, lambda *_: (0,) * len(shape))

    flops = 2 * B_p * (d_in_p * h1_p + h1_p * h2_p + h2_p * d_out_p)
    bytes_accessed = (
        xp.size * xp.dtype.itemsize
        + sum(a.size * a.dtype.itemsize for a in (w1, b1, w2, b2, w3, b3))
        + B_p * d_out_p * x.dtype.itemsize
    )

    kernel = functools.partial(_mlp_kernel, act_dtype=act_dtype,
                               apply_sigmoid=apply_sigmoid)

    out_padded = pl.pallas_call(
        kernel,
        out_shape=jax.ShapeDtypeStruct((B_p, d_out_p), x.dtype),
        grid_spec=pltpu.PrefetchScalarGridSpec(
            num_scalar_prefetch=0,
            grid=(num_tiles,),
            in_specs=[
                pl.BlockSpec((blk, d_in_p), lambda i: (i, 0)),      # x tile
                resident((d_in_p, h1_p)), resident((1, h1_p)),      # W1, b1
                resident((h1_p, h2_p)), resident((1, h2_p)),        # W2, b2
                resident((h2_p, d_out_p)), resident((1, d_out_p)),  # W3, b3
            ],
            out_specs=pl.BlockSpec((blk, d_out_p), lambda i: (i, 0)),
        ),
        compiler_params=pltpu.CompilerParams(
            dimension_semantics=("parallel",),
        ),
        cost_estimate=pl.CostEstimate(
            flops=int(flops),
            transcendentals=int(B_p * d_out_p) if apply_sigmoid else 0,
            bytes_accessed=int(bytes_accessed),
        ),
    )(xp, w1, b1, w2, b2, w3, b3)

    return out_padded[:B, :d_out]


def mlp_forward(x, prepared_params, *, block_b=1024, apply_sigmoid=False):
    """x: (B, input_dim) f32; prepared_params from prepare_mlp_params()."""
    prepared, meta = prepared_params
    args = (x, prepared["w1"], prepared["b1"], prepared["w2"], prepared["b2"],
            prepared["w3"], prepared["b3"])
    kwargs = dict(d_out=meta["d_out"], block_b=block_b,
                  act_dtype=meta["act_dtype"], apply_sigmoid=apply_sigmoid)
    try:
        return _mlp_forward_impl(*args, single_buffer_weights=True, **kwargs)
    except Exception:
        # Fallback for jax versions where pipeline_mode=pl.Buffered(1) on a
        # top-level pallas_call BlockSpec is not supported.
        return _mlp_forward_impl(*args, single_buffer_weights=False, **kwargs)


# ---------------------------------------------------------------------------
# Init + reference
# ---------------------------------------------------------------------------
def init_mlp_params(key, input_dim, output_dim, hidden_size=(64, 48)):
    """Deterministic init mirroring torch.nn.Linear's U(-1/sqrt(fan_in), ...)."""
    dims = [input_dim, *hidden_size, output_dim]
    params = []
    for i in range(len(dims) - 1):
        key, kw, kb = jax.random.split(key, 3)
        fan_in, fan_out = dims[i], dims[i + 1]
        bound = 1.0 / jnp.sqrt(jnp.float32(fan_in))
        w = jax.random.uniform(kw, (fan_in, fan_out), jnp.float32, -bound, bound)
        b = jax.random.uniform(kb, (1, fan_out), jnp.float32, -bound, bound)
        params.append((w, b))
    return params


def mlp_reference(x, params):
    """Pure-JAX f32 reference for correctness check."""
    (w1, b1), (w2, b2), (w3, b3) = params
    h = jnp.maximum(x @ w1 + b1, 0.0)
    h = jnp.maximum(h @ w2 + b2, 0.0)
    return h @ w3 + b3


if __name__ == "__main__":
    key = jax.random.PRNGKey(0)
    k_x, k_p = jax.random.split(key)

    batch = 50               # deliberately NOT a multiple of 8 (tests padding)
    input_dim = 32
    hidden_size = (64, 48)
    output_dim = 24

    x = jax.random.normal(k_x, (batch, input_dim), dtype=jnp.float32)
    params = init_mlp_params(k_p, input_dim, output_dim, hidden_size)

    prepared = prepare_mlp_params(params)   # pad + cast ONCE, not per call

    out = mlp_forward(x, prepared)
    out = jax.block_until_ready(out)

    ref = mlp_reference(x, params)
    assert out.shape == (batch, output_dim)
    # bf16 MXU inputs / bf16 epilogue (v6e/v7x) with f32 accumulation:
    # small (~1e-2) deviation from the f32 reference is expected.
    assert jnp.allclose(out, ref, atol=5e-2, rtol=5e-2), "mismatch vs reference"

    print("KERNEL_OK")
</pallas_src>

<mosaic_0001>
module attributes {stable_mosaic.version = 11 : i64} {
  func.func @_mlp_kernel(%arg0: i32, %arg1: memref<56x128xbf16, #tpu.memory_space<vmem>>, %arg2: memref<128x128xbf16, #tpu.memory_space<vmem>>, %arg3: memref<1x128xf32, #tpu.memory_space<vmem>>, %arg4: memref<128x128xbf16, #tpu.memory_space<vmem>>, %arg5: memref<1x128xf32, #tpu.memory_space<vmem>>, %arg6: memref<128x128xbf16, #tpu.memory_space<vmem>>, %arg7: memref<1x128xf32, #tpu.memory_space<vmem>>, %arg8: memref<56x128xf32, #tpu.memory_space<vmem>>) attributes {dimension_semantics = [#tpu.dimension_semantics<parallel>], iteration_bounds = array<i64: 1>, scalar_prefetch = 0 : i64, scratch_operands = 0 : i64, tpu.core_type = #tpu.core_type<tc>, window_params = [{transform_indices = @transform_0, window_bounds = array<i64: 56, 128>}, {pipeline_mode = #tpu.pipeline_mode<synchronous>, transform_indices = @transform_1, window_bounds = array<i64: 128, 128>}, {pipeline_mode = #tpu.pipeline_mode<synchronous>, transform_indices = @transform_2, window_bounds = array<i64: 1, 128>}, {pipeline_mode = #tpu.pipeline_mode<synchronous>, transform_indices = @transform_3, window_bounds = array<i64: 128, 128>}, {pipeline_mode = #tpu.pipeline_mode<synchronous>, transform_indices = @transform_4, window_bounds = array<i64: 1, 128>}, {pipeline_mode = #tpu.pipeline_mode<synchronous>, transform_indices = @transform_5, window_bounds = array<i64: 128, 128>}, {pipeline_mode = #tpu.pipeline_mode<synchronous>, transform_indices = @transform_6, window_bounds = array<i64: 1, 128>}, {transform_indices = @transform_7, window_bounds = array<i64: 56, 128>}]} {
    %c0 = arith.constant 0 : index
    %c0_0 = arith.constant 0 : index
    %0 = vector.load %arg1[%c0, %c0_0] : memref<56x128xbf16, #tpu.memory_space<vmem>>, vector<56x128xbf16>
    %c0_1 = arith.constant 0 : index
    %c0_2 = arith.constant 0 : index
    %1 = vector.load %arg2[%c0_1, %c0_2] : memref<128x128xbf16, #tpu.memory_space<vmem>>, vector<128x128xbf16>
    %cst = arith.constant dense<0.000000e+00> : vector<56x128xf32>
    %2 = tpu.matmul %0, %1, %cst {dimension_numbers = #tpu.dot_dimension_numbers<[1], [0], [0], [1], [0, 0, 1, 1], [], []>} : vector<56x128xbf16>, vector<128x128xbf16>, vector<56x128xf32> -> vector<56x128xf32>
    %c0_3 = arith.constant 0 : index
    %c0_4 = arith.constant 0 : index
    %3 = vector.load %arg3[%c0_3, %c0_4] : memref<1x128xf32, #tpu.memory_space<vmem>>, vector<1x128xf32>
    %4 = vector.broadcast %3 : vector<1x128xf32> to vector<56x128xf32>
    %5 = arith.addf %2, %4 : vector<56x128xf32>
    %cst_5 = arith.constant 0.000000e+00 : f32
    %6 = vector.broadcast %cst_5 : f32 to vector<56x128xf32>
    %7 = arith.maximumf %5, %6 : vector<56x128xf32>
    %8 = arith.truncf %7 : vector<56x128xf32> to vector<56x128xbf16>
    %c0_6 = arith.constant 0 : index
    %c0_7 = arith.constant 0 : index
    %9 = vector.load %arg4[%c0_6, %c0_7] : memref<128x128xbf16, #tpu.memory_space<vmem>>, vector<128x128xbf16>
    %cst_8 = arith.constant dense<0.000000e+00> : vector<56x128xf32>
    %10 = tpu.matmul %8, %9, %cst_8 {dimension_numbers = #tpu.dot_dimension_numbers<[1], [0], [0], [1], [0, 0, 1, 1], [], []>} : vector<56x128xbf16>, vector<128x128xbf16>, vector<56x128xf32> -> vector<56x128xf32>
    %c0_9 = arith.constant 0 : index
    %c0_10 = arith.constant 0 : index
    %11 = vector.load %arg5[%c0_9, %c0_10] : memref<1x128xf32, #tpu.memory_space<vmem>>, vector<1x128xf32>
    %12 = vector.broadcast %11 : vector<1x128xf32> to vector<56x128xf32>
    %13 = arith.addf %10, %12 : vector<56x128xf32>
    %cst_11 = arith.constant 0.000000e+00 : f32
    %14 = vector.broadcast %cst_11 : f32 to vector<56x128xf32>
    %15 = arith.maximumf %13, %14 : vector<56x128xf32>
    %16 = arith.truncf %15 : vector<56x128xf32> to vector<56x128xbf16>
    %c0_12 = arith.constant 0 : index
    %c0_13 = arith.constant 0 : index
    %17 = vector.load %arg6[%c0_12, %c0_13] : memref<128x128xbf16, #tpu.memory_space<vmem>>, vector<128x128xbf16>
    %cst_14 = arith.constant dense<0.000000e+00> : vector<56x128xf32>
    %18 = tpu.matmul %16, %17, %cst_14 {dimension_numbers = #tpu.dot_dimension_numbers<[1], [0], [0], [1], [0, 0, 1, 1], [], []>} : vector<56x128xbf16>, vector<128x128xbf16>, vector<56x128xf32> -> vector<56x128xf32>
    %c0_15 = arith.constant 0 : index
    %c0_16 = arith.constant 0 : index
    %19 = vector.load %arg7[%c0_15, %c0_16] : memref<1x128xf32, #tpu.memory_space<vmem>>, vector<1x128xf32>
    %20 = vector.broadcast %19 : vector<1x128xf32> to vector<56x128xf32>
    %21 = arith.addf %18, %20 : vector<56x128xf32>
    %c0_17 = arith.constant 0 : index
    %c0_18 = arith.constant 0 : index
    %22 = vector.load %arg8[%c0_17, %c0_18] : memref<56x128xf32, #tpu.memory_space<vmem>>, vector<56x128xf32>
    tpu.vector_store %arg8[%c0_17, %c0_18], %21 {strides = array<i32>} : memref<56x128xf32, #tpu.memory_space<vmem>>, vector<56x128xf32>,
    return
  }
  func.func @transform_0(%arg0: i32) -> (i32, i32) {
    %c0_i32 = arith.constant 0 : i32
    %c0_i32_0 = arith.constant 0 : i32
    return %arg0, %c0_i32 : i32, i32
  }
  func.func @transform_1(%arg0: i32) -> (i32, i32) {
    %c0_i32 = arith.constant 0 : i32
    %c0_i32_0 = arith.constant 0 : i32
    %c0_i32_1 = arith.constant 0 : i32
    return %c0_i32, %c0_i32_0 : i32, i32
  }
  func.func @transform_2(%arg0: i32) -> (i32, i32) {
    %c0_i32 = arith.constant 0 : i32
    %c0_i32_0 = arith.constant 0 : i32
    %c0_i32_1 = arith.constant 0 : i32
    return %c0_i32, %c0_i32_0 : i32, i32
  }
  func.func @transform_3(%arg0: i32) -> (i32, i32) {
    %c0_i32 = arith.constant 0 : i32
    %c0_i32_0 = arith.constant 0 : i32
    %c0_i32_1 = arith.constant 0 : i32
    return %c0_i32, %c0_i32_0 : i32, i32
  }
  func.func @transform_4(%arg0: i32) -> (i32, i32) {
    %c0_i32 = arith.constant 0 : i32
    %c0_i32_0 = arith.constant 0 : i32
    %c0_i32_1 = arith.constant 0 : i32
    return %c0_i32, %c0_i32_0 : i32, i32
  }
  func.func @transform_5(%arg0: i32) -> (i32, i32) {
    %c0_i32 = arith.constant 0 : i32
    %c0_i32_0 = arith.constant 0 : i32
    %c0_i32_1 = arith.constant 0 : i32
    return %c0_i32, %c0_i32_0 : i32, i32
  }
  func.func @transform_6(%arg0: i32) -> (i32, i32) {
    %c0_i32 = arith.constant 0 : i32
    %c0_i32_0 = arith.constant 0 : i32
    %c0_i32_1 = arith.constant 0 : i32
    return %c0_i32, %c0_i32_0 : i32, i32
  }
  func.func @transform_7(%arg0: i32) -> (i32, i32) {
    %c0_i32 = arith.constant 0 : i32
    %c0_i32_0 = arith.constant 0 : i32
    return %arg0, %c0_i32 : i32, i32
  }
}

module attributes {stable_mosaic.version = 11 : i64} {
  func.func @_mlp_kernel(%arg0: i32, %arg1: memref<56x128xbf16, #tpu.memory_space<vmem>>, %arg2: memref<128x128xbf16, #tpu.memory_space<vmem>>, %arg3: memref<1x128xf32, #tpu.memory_space<vmem>>, %arg4: memref<128x128xbf16, #tpu.memory_space<vmem>>, %arg5: memref<1x128xf32, #tpu.memory_space<vmem>>, %arg6: memref<128x128xbf16, #tpu.memory_space<vmem>>, %arg7: memref<1x128xf32, #tpu.memory_space<vmem>>, %arg8: memref<56x128xf32, #tpu.memory_space<vmem>>) attributes {dimension_semantics = [#tpu.dimension_semantics<parallel>], iteration_bounds = array<i64: 1>, scalar_prefetch = 0 : i64, scratch_operands = 0 : i64, tpu.core_type = #tpu.core_type<tc>, window_params = [{transform_indices = @transform_0, window_bounds = array<i64: 56, 128>}, {pipeline_mode = #tpu.pipeline_mode<synchronous>, transform_indices = @transform_1, window_bounds = array<i64: 128, 128>}, {pipeline_mode = #tpu.pipeline_mode<synchronous>, transform_indices = @transform_2, window_bounds = array<i64: 1, 128>}, {pipeline_mode = #tpu.pipeline_mode<synchronous>, transform_indices = @transform_3, window_bounds = array<i64: 128, 128>}, {pipeline_mode = #tpu.pipeline_mode<synchronous>, transform_indices = @transform_4, window_bounds = array<i64: 1, 128>}, {pipeline_mode = #tpu.pipeline_mode<synchronous>, transform_indices = @transform_5, window_bounds = array<i64: 128, 128>}, {pipeline_mode = #tpu.pipeline_mode<synchronous>, transform_indices = @transform_6, window_bounds = array<i64: 1, 128>}, {transform_indices = @transform_7, window_bounds = array<i64: 56, 128>}]} {
    %c0 = arith.constant 0 : index
    %c0_0 = arith.constant 0 : index
    %0 = vector.load %arg1[%c0, %c0_0] : memref<56x128xbf16, #tpu.memory_space<vmem>>, vector<56x128xbf16>
    %c0_1 = arith.constant 0 : index
    %c0_2 = arith.constant 0 : index
    %1 = vector.load %arg2[%c0_1, %c0_2] : memref<128x128xbf16, #tpu.memory_space<vmem>>, vector<128x128xbf16>
    %cst = arith.constant dense<0.000000e+00> : vector<56x128xf32>
    %2 = tpu.matmul %0, %1, %cst {dimension_numbers = #tpu.dot_dimension_numbers<[1], [0], [0], [1], [0, 0, 1, 1], [], []>} : vector<56x128xbf16>, vector<128x128xbf16>, vector<56x128xf32> -> vector<56x128xf32>
    %c0_3 = arith.constant 0 : index
    %c0_4 = arith.constant 0 : index
    %3 = vector.load %arg3[%c0_3, %c0_4] : memref<1x128xf32, #tpu.memory_space<vmem>>, vector<1x128xf32>
    %4 = vector.broadcast %3 : vector<1x128xf32> to vector<56x128xf32>
    %5 = arith.addf %2, %4 : vector<56x128xf32>
    %cst_5 = arith.constant 0.000000e+00 : f32
    %6 = vector.broadcast %cst_5 : f32 to vector<56x128xf32>
    %7 = arith.maximumf %5, %6 : vector<56x128xf32>
    %8 = arith.truncf %7 : vector<56x128xf32> to vector<56x128xbf16>
    %c0_6 = arith.constant 0 : index
    %c0_7 = arith.constant 0 : index
    %9 = vector.load %arg4[%c0_6, %c0_7] : memref<128x128xbf16, #tpu.memory_space<vmem>>, vector<128x128xbf16>
    %cst_8 = arith.constant dense<0.000000e+00> : vector<56x128xf32>
    %10 = tpu.matmul %8, %9, %cst_8 {dimension_numbers = #tpu.dot_dimension_numbers<[1], [0], [0], [1], [0, 0, 1, 1], [], []>} : vector<56x128xbf16>, vector<128x128xbf16>, vector<56x128xf32> -> vector<56x128xf32>
    %c0_9 = arith.constant 0 : index
    %c0_10 = arith.constant 0 : index
    %11 = vector.load %arg5[%c0_9, %c0_10] : memref<1x128xf32, #tpu.memory_space<vmem>>, vector<1x128xf32>
    %12 = vector.broadcast %11 : vector<1x128xf32> to vector<56x128xf32>
    %13 = arith.addf %10, %12 : vector<56x128xf32>
    %cst_11 = arith.constant 0.000000e+00 : f32
    %14 = vector.broadcast %cst_11 : f32 to vector<56x128xf32>
    %15 = arith.maximumf %13, %14 : vector<56x128xf32>
    %16 = arith.truncf %15 : vector<56x128xf32> to vector<56x128xbf16>
    %c0_12 = arith.constant 0 : index
    %c0_13 = arith.constant 0 : index
    %17 = vector.load %arg6[%c0_12, %c0_13] : memref<128x128xbf16, #tpu.memory_space<vmem>>, vector<128x128xbf16>
    %cst_14 = arith.constant dense<0.000000e+00> : vector<56x128xf32>
    %18 = tpu.matmul %16, %17, %cst_14 {dimension_numbers = #tpu.dot_dimension_numbers<[1], [0], [0], [1], [0, 0, 1, 1], [], []>} : vector<56x128xbf16>, vector<128x128xbf16>, vector<56x128xf32> -> vector<56x128xf32>
    %c0_15 = arith.constant 0 : index
    %c0_16 = arith.constant 0 : index
    %19 = vector.load %arg7[%c0_15, %c0_16] : memref<1x128xf32, #tpu.memory_space<vmem>>, vector<1x128xf32>
    %20 = vector.broadcast %19 : vector<1x128xf32> to vector<56x128xf32>
    %21 = arith.addf %18, %20 : vector<56x128xf32>
    %c0_17 = arith.constant 0 : index
    %c0_18 = arith.constant 0 : index
    %22 = vector.load %arg8[%c0_17, %c0_18] : memref<56x128xf32, #tpu.memory_space<vmem>>, vector<56x128xf32>
    tpu.vector_store %arg8[%c0_17, %c0_18], %21 {strides = array<i32>} : memref<56x128xf32, #tpu.memory_space<vmem>>, vector<56x128xf32>,
    return
  }
  func.func @transform_0(%arg0: i32) -> (i32, i32) {
    %c0_i32 = arith.constant 0 : i32
    %c0_i32_0 = arith.constant 0 : i32
    return %arg0, %c0_i32 : i32, i32
  }
  func.func @transform_1(%arg0: i32) -> (i32, i32) {
    %c0_i32 = arith.constant 0 : i32
    %c0_i32_0 = arith.constant 0 : i32
    %c0_i32_1 = arith.constant 0 : i32
    return %c0_i32, %c0_i32_0 : i32, i32
  }
  func.func @transform_2(%arg0: i32) -> (i32, i32) {
    %c0_i32 = arith.constant 0 : i32
    %c0_i32_0 = arith.constant 0 : i32
    %c0_i32_1 = arith.constant 0 : i32
    return %c0_i32, %c0_i32_0 : i32, i32
  }
  func.func @transform_3(%arg0: i32) -> (i32, i32) {
    %c0_i32 = arith.constant 0 : i32
    %c0_i32_0 = arith.constant 0 : i32
    %c0_i32_1 = arith.constant 0 : i32
    return %c0_i32, %c0_i32_0 : i32, i32
  }
  func.func @transform_4(%arg0: i32) -> (i32, i32) {
    %c0_i32 = arith.constant 0 : i32
    %c0_i32_0 = arith.constant 0 : i32
    %c0_i32_1 = arith.constant 0 : i32
    return %c0_i32, %c0_i32_0 : i32, i32
  }
  func.func @transform_5(%arg0: i32) -> (i32, i32) {
    %c0_i32 = arith.constant 0 : i32
    %c0_i32_0 = arith.constant 0 : i32
    %c0_i32_1 = arith.constant 0 : i32
    return %c0_i32, %c0_i32_0 : i32, i32
  }
  func.func @transform_6(%arg0: i32) -> (i32, i32) {
    %c0_i32 = arith.constant 0 : i32
    %c0_i32_0 = arith.constant 0 : i32
    %c0_i32_1 = arith.constant 0 : i32
    return %c0_i32, %c0_i32_0 : i32, i32
  }
  func.func @transform_7(%arg0: i32) -> (i32, i32) {
    %c0_i32 = arith.constant 0 : i32
    %c0_i32_0 = arith.constant 0 : i32
    return %arg0, %c0_i32 : i32, i32
  }
}

</mosaic_0001>

<llo_original>
// kernel: _mlp_forward_impl.1
$region0: #{_mlp_forward_impl.1}
  #allocation0 [shape = 'u32[]', space=smem, size = 0x4, offset = 0x4, fixed_abs, tag = 'smem constant byte address 0x4 - core index']
  #allocation1 [shape = 'u32[72,128]{1,0:T(1,128)}', space=vmem, size = 0x9000, scoped, tag = 'internal scratch']
  %s0 = inlined_call_operand.vmem [shape: bf16[56,128], index: 0, kind: input, shape index: {}]
  %s1 = inlined_call_operand.vmem [shape: bf16[128,128], index: 1, kind: input, shape index: {}]
  %s2 = inlined_call_operand.vmem [shape: f32[1,128], index: 2, kind: input, shape index: {}]
  %s3 = inlined_call_operand.vmem [shape: bf16[128,128], index: 3, kind: input, shape index: {}]
  %s4 = inlined_call_operand.vmem [shape: f32[1,128], index: 4, kind: input, shape index: {}]
  %s5 = inlined_call_operand.hbm [shape: bf16[128,128], index: 5, kind: input, shape index: {}]
  %s6 = inlined_call_operand.vmem [shape: f32[1,128], index: 6, kind: input, shape index: {}]
  %s7 = inlined_call_operand.vmem [shape: f32[56,128], index: 7, kind: output, shape index: {}]
  %s8 = sld [smem:[#allocation0]]
  $region42: #{_mlp_forward_impl.1} parent=0
    _
  %s10 = ssub.s32 1, %s8
  %s11 = scalar_select 0, %s10, %s8
  $region1: #{_mlp_forward_impl.1} parent=0
    #allocation2 [shape = 'u8[32768]{0}', space=vmem, size = 0x8000, scoped, tag = 'input window, operand 5, single buffered']
    #allocation3 [shape = 's32[1]{0}', space=sflag, size = 0x4, scoped, tag = 'scoped memory for _mlp_forward_impl.1']
    %12 = vsyncpa [#allocation3], 0
    // Predicated region
    $region2: #{_mlp_forward_impl.1} parent=1 // pred_check
      _
    $region3: #{_mlp_forward_impl.1} parent=1 // pred_check_branch
      %14 = sbr.rel (0) target = $region5
    $region4: #{_mlp_forward_impl.1} parent=1 // pred_region
      _
    $region5: #{_mlp_forward_impl.1} parent=1 // pred_fallthru
      _
    // Predicated region
    $region6: #{_mlp_forward_impl.1} parent=1 // pred_check
      _
    $region7: #{_mlp_forward_impl.1} parent=1 // pred_check_branch
      %16 = sbr.rel (0) target = $region9
    $region8: #{_mlp_forward_impl.1} parent=1 // pred_region
      _
    $region9: #{_mlp_forward_impl.1} parent=1 // pred_fallthru
      _
    // Predicated region
    $region10: #{_mlp_forward_impl.1} parent=1 // pred_check
      _
    $region11: #{_mlp_forward_impl.1} parent=1 // pred_check_branch
      %18 = sbr.rel (0) target = $region13
    $region12: #{_mlp_forward_impl.1} parent=1 // pred_region
      _
    $region13: #{_mlp_forward_impl.1} parent=1 // pred_fallthru
      _
    // Predicated region
    $region14: #{_mlp_forward_impl.1} parent=1 // pred_check
      _
    $region15: #{_mlp_forward_impl.1} parent=1 // pred_check_branch
      %20 = sbr.rel (0) target = $region17
    $region16: #{_mlp_forward_impl.1} parent=1 // pred_region
      _
    $region17: #{_mlp_forward_impl.1} parent=1 // pred_fallthru
      _
    // Predicated region
    $region18: #{_mlp_forward_impl.1} parent=1 // pred_check
      _
    $region19: #{_mlp_forward_impl.1} parent=1 // pred_check_branch
      %22 = sbr.rel (0) target = $region21
    $region20: #{_mlp_forward_impl.1} parent=1 // pred_region
      _
    $region21: #{_mlp_forward_impl.1} parent=1 // pred_fallthru
      _
    // Predicated region
    $region22: #{_mlp_forward_impl.1} parent=1 // pred_check
      _
    $region23: #{_mlp_forward_impl.1} parent=1 // pred_check_branch
      %24 = sbr.rel (0) target = $region25
    $region24: #{_mlp_forward_impl.1} parent=1 // pred_region
      %26 = vsyncadd [#allocation3], 0
      %s27 = sshll.u32 %s5, 4
      %s28 = int_to_ptr.hbm [resolvable:$true] %s27
      %s29 = sshll.u32 [#allocation2], 4
      %s30 = int_to_ptr.vmem [resolvable:$true] %s29
      %35 = dma.hbm_to_vmem [thread:$0]  %s28, 1024, %s30, [#allocation3], 64, 64, 4
    $region25: #{_mlp_forward_impl.1} parent=1 // pred_fallthru
      _
    // Predicated region
    $region26: #{_mlp_forward_impl.1} parent=1 // pred_check
      _
    $region27: #{_mlp_forward_impl.1} parent=1 // pred_check_branch
      %37 = sbr.rel (0) target = $region29
    $region28: #{_mlp_forward_impl.1} parent=1 // pred_region
      _
    $region29: #{_mlp_forward_impl.1} parent=1 // pred_fallthru
      _
    // Predicated region
    $region30: #{_mlp_forward_impl.1} parent=1 // pred_check
      _
    $region31: #{_mlp_forward_impl.1} parent=1 // pred_check_branch
      %39 = sbr.rel (0) target = $region33
    $region32: #{_mlp_forward_impl.1} parent=1 // pred_region
      %41 = dma.done [#allocation3], 1024
    $region33: #{_mlp_forward_impl.1} parent=1 // pred_fallthru
      _
    %v42 = vld [vmem:[%s0] sm:$0xf]
    %v43 = vld [vmem:[%s0 + $0x4] sm:$0xf]
    %v44 = vld [vmem:[%s0 + $0x8] sm:$0xf]
    %v45 = vld [vmem:[%s0 + $0xc] sm:$0xf]
    %v46 = vld [vmem:[%s0 + $0x10] sm:$0xf]
    %v47 = vld [vmem:[%s0 + $0x14] sm:$0xf]
    %v48 = vld [vmem:[%s0 + $0x18] sm:$0xf]
    %v49 = vld [vmem:[%s1] sm:$0xf]
    %v50 = vld [vmem:[%s1 + $0x4] sm:$0xf]
    %v51 = vld [vmem:[%s1 + $0x8] sm:$0xf]
    %v52 = vld [vmem:[%s1 + $0xc] sm:$0xf]
    %v53 = vld [vmem:[%s1 + $0x10] sm:$0xf]
    %v54 = vld [vmem:[%s1 + $0x14] sm:$0xf]
    %v55 = vld [vmem:[%s1 + $0x18] sm:$0xf]
    %v56 = vld [vmem:[%s1 + $0x1c] sm:$0xf]
    %v57 = vld [vmem:[%s1 + $0x20] sm:$0xf]
    %v58 = vld [vmem:[%s1 + $0x24] sm:$0xf]
    %v59 = vld [vmem:[%s1 + $0x28] sm:$0xf]
    %v60 = vld [vmem:[%s1 + $0x2c] sm:$0xf]
    %v61 = vld [vmem:[%s1 + $0x30] sm:$0xf]
    %v62 = vld [vmem:[%s1 + $0x34] sm:$0xf]
    %v63 = vld [vmem:[%s1 + $0x38] sm:$0xf]
    %v64 = vld [vmem:[%s1 + $0x3c] sm:$0xf]
    %v65 = vld [vmem:[%s2] sm:$0x1]
    %v67 = vperm.slane %v65, 0
    %v76 = vunpack.c.l.b16 %v42
    %v77 = vunpack.c.l.b16 %v43
    %v78 = vunpack.c.l.b16 %v44
    %v79 = vunpack.c.l.b16 %v45
    %v80 = vunpack.c.l.b16 %v46
    %v81 = vunpack.c.l.b16 %v47
    %v82 = vunpack.c.l.b16 %v48
    %v83 = vpack.c.b16 %v77, %v76
    %v84 = vpack.c.b16 %v79, %v78
    %v85 = vpack.c.b16 %v81, %v80
    %v86 = vpack.c.b16 %v82, %v82
    %v107 = vunpack.c.l.b16 %v49
    %v108 = vunpack.c.l.b16 %v50
    %v109 = vunpack.c.l.b16 %v51
    %v110 = vunpack.c.l.b16 %v52
    %v111 = vunpack.c.l.b16 %v53
    %v112 = vunpack.c.l.b16 %v54
    %v113 = vunpack.c.l.b16 %v55
    %v114 = vunpack.c.l.b16 %v56
    %v115 = vunpack.c.l.b16 %v57
    %v116 = vunpack.c.l.b16 %v58
    %v117 = vunpack.c.l.b16 %v59
    %v118 = vunpack.c.l.b16 %v60
    %v119 = vunpack.c.l.b16 %v61
    %v120 = vunpack.c.l.b16 %v62
    %v121 = vunpack.c.l.b16 %v63
    %v122 = vunpack.c.l.b16 %v64
    %v123 = vpack.c.b16 %v108, %v107
    %v124 = vpack.c.b16 %v110, %v109
    %v125 = vpack.c.b16 %v112, %v111
    %v126 = vpack.c.b16 %v114, %v113
    %v127 = vpack.c.b16 %v116, %v115
    %v128 = vpack.c.b16 %v118, %v117
    %v129 = vpack.c.b16 %v120, %v119
    %v130 = vpack.c.b16 %v122, %v121
    %139 = vmatpush.bf16.msra.mxu0 %v130
    %140 = vmatpush.bf16.msra.mxu0 %v129
    %141 = vmatpush.bf16.msra.mxu0 %v128
    %142 = vmatpush.bf16.msra.mxu0 %v127
    %143 = vmatpush.bf16.msra.mxu0 %v126
    %144 = vmatpush.bf16.msra.mxu0 %v125
    %145 = vmatpush.bf16.msra.mxu0 %v124
    %146 = vmatpush.bf16.msra.mxu0 %v123
    %147 = vmatmul.bf16.gmra.mxu0 %v83
    %v148 = vpop.f32.mrf.mxu0
    %v149 = vadd.f32 %v67, %v148
    %v150 = vpop.f32.mrf.mxu0
    %v151 = vadd.f32 %v67, %v150
    %152 = vmatmul.bf16.gmra.mxu0 %v84
    %v153 = vpop.f32.mrf.mxu0
    %v154 = vadd.f32 %v67, %v153
    %v155 = vpop.f32.mrf.mxu0
    %v156 = vadd.f32 %v67, %v155
    %157 = vmatmul.bf16.gmra.mxu0 %v85
    %v158 = vpop.f32.mrf.mxu0
    %v159 = vadd.f32 %v67, %v158
    %v160 = vpop.f32.mrf.mxu0
    %v161 = vadd.f32 %v67, %v160
    %162 = vmatmul.bf16.gmra.mxu0 %v86
    %v163 = vpop.f32.mrf.mxu0
    %v164 = vadd.f32 %v67, %v163
    %v165 = vpop.f32.mrf.mxu0
    %166 = vdwg.mxu0
    %v167 = vmax.f32 %v149, 0.0
    %v168 = vmax.f32 %v151, 0.0
    %v169 = vmax.f32 %v154, 0.0
    %v170 = vmax.f32 %v156, 0.0
    %v171 = vmax.f32 %v159, 0.0
    %v172 = vmax.f32 %v161, 0.0
    %v173 = vmax.f32 %v164, 0.0
    %v174 = vpack.c.bf16 %v168, %v167
    %v175 = vpack.c.bf16 %v170, %v169
    %v176 = vpack.c.bf16 %v172, %v171
    %v177 = vpack.c.bf16 %v173, %v173
    %v178 = vld [vmem:[%s3] sm:$0xf]
    %v179 = vld [vmem:[%s3 + $0x4] sm:$0xf]
    %v180 = vld [vmem:[%s3 + $0x8] sm:$0xf]
    %v181 = vld [vmem:[%s3 + $0xc] sm:$0xf]
    %v182 = vld [vmem:[%s3 + $0x10] sm:$0xf]
    %v183 = vld [vmem:[%s3 + $0x14] sm:$0xf]
    %v184 = vld [vmem:[%s3 + $0x18] sm:$0xf]
    %v185 = vld [vmem:[%s3 + $0x1c] sm:$0xf]
    %v186 = vld [vmem:[%s3 + $0x20] sm:$0xf]
    %v187 = vld [vmem:[%s3 + $0x24] sm:$0xf]
    %v188 = vld [vmem:[%s3 + $0x28] sm:$0xf]
    %v189 = vld [vmem:[%s3 + $0x2c] sm:$0xf]
    %v190 = vld [vmem:[%s3 + $0x30] sm:$0xf]
    %v191 = vld [vmem:[%s3 + $0x34] sm:$0xf]
    %v192 = vld [vmem:[%s3 + $0x38] sm:$0xf]
    %v193 = vld [vmem:[%s3 + $0x3c] sm:$0xf]
    %v194 = vld [vmem:[%s4] sm:$0x1]
    %v196 = vperm.slane %v194, 0
    %v214 = vunpack.c.l.b16 %v178
    %v215 = vunpack.c.l.b16 %v179
    %v216 = vunpack.c.l.b16 %v180
    %v217 = vunpack.c.l.b16 %v181
    %v218 = vunpack.c.l.b16 %v182
    %v219 = vunpack.c.l.b16 %v183
    %v220 = vunpack.c.l.b16 %v184
    %v221 = vunpack.c.l.b16 %v185
    %v222 = vunpack.c.l.b16 %v186
    %v223 = vunpack.c.l.b16 %v187
    %v224 = vunpack.c.l.b16 %v188
    %v225 = vunpack.c.l.b16 %v189
    %v226 = vunpack.c.l.b16 %v190
    %v227 = vunpack.c.l.b16 %v191
    %v228 = vunpack.c.l.b16 %v192
    %v229 = vunpack.c.l.b16 %v193
    %v230 = vpack.c.b16 %v215, %v214
    %v231 = vpack.c.b16 %v217, %v216
    %v232 = vpack.c.b16 %v219, %v218
    %v233 = vpack.c.b16 %v221, %v220
    %v234 = vpack.c.b16 %v223, %v222
    %v235 = vpack.c.b16 %v225, %v224
    %v236 = vpack.c.b16 %v227, %v226
    %v237 = vpack.c.b16 %v229, %v228
    %246 = vmatpush.bf16.msra.mxu0 %v237
    %247 = vmatpush.bf16.msra.mxu0 %v236
    %248 = vmatpush.bf16.msra.mxu0 %v235
    %249 = vmatpush.bf16.msra.mxu0 %v234
    %250 = vmatpush.bf16.msra.mxu0 %v233
    %251 = vmatpush.bf16.msra.mxu0 %v232
    %252 = vmatpush.bf16.msra.mxu0 %v231
    %253 = vmatpush.bf16.msra.mxu0 %v230
    %254 = vmatmul.bf16.gmra.mxu0 %v174
    %v255 = vpop.f32.mrf.mxu0
    %v256 = vadd.f32 %v196, %v255
    %v257 = vpop.f32.mrf.mxu0
    %v258 = vadd.f32 %v196, %v257
    %259 = vmatmul.bf16.gmra.mxu0 %v175
    %v260 = vpop.f32.mrf.mxu0
    %v261 = vadd.f32 %v196, %v260
    %v262 = vpop.f32.mrf.mxu0
    %v263 = vadd.f32 %v196, %v262
    %264 = vmatmul.bf16.gmra.mxu0 %v176
    %v265 = vpop.f32.mrf.mxu0
    %v266 = vadd.f32 %v196, %v265
    %v267 = vpop.f32.mrf.mxu0
    %v268 = vadd.f32 %v196, %v267
    %269 = vmatmul.bf16.gmra.mxu0 %v177
    %v270 = vpop.f32.mrf.mxu0
    %v271 = vadd.f32 %v196, %v270
    %v272 = vpop.f32.mrf.mxu0
    %273 = vdwg.mxu0
    %v274 = vmax.f32 %v256, 0.0
    %v275 = vmax.f32 %v258, 0.0
    %v276 = vmax.f32 %v261, 0.0
    %v277 = vmax.f32 %v263, 0.0
    %v278 = vmax.f32 %v266, 0.0
    %v279 = vmax.f32 %v268, 0.0
    %v280 = vmax.f32 %v271, 0.0
    %v281 = vpack.c.bf16 %v275, %v274
    %v282 = vpack.c.bf16 %v277, %v276
    %v283 = vpack.c.bf16 %v279, %v278
    %v284 = vpack.c.bf16 %v280, %v280
    %v285 = vld [vmem:[#allocation2] sm:$0xf]
    %v286 = vld [vmem:[#allocation2 + $0x4] sm:$0xf]
    %v287 = vld [vmem:[#allocation2 + $0x8] sm:$0xf]
    %v288 = vld [vmem:[#allocation2 + $0xc] sm:$0xf]
    %v289 = vld [vmem:[#allocation2 + $0x10] sm:$0xf]
    %v290 = vld [vmem:[#allocation2 + $0x14] sm:$0xf]
    %v291 = vld [vmem:[#allocation2 + $0x18] sm:$0xf]
    %v292 = vld [vmem:[#allocation2 + $0x1c] sm:$0xf]
    %v293 = vld [vmem:[#allocation2 + $0x20] sm:$0xf]
    %v294 = vld [vmem:[#allocation2 + $0x24] sm:$0xf]
    %v295 = vld [vmem:[#allocation2 + $0x28] sm:$0xf]
    %v296 = vld [vmem:[#allocation2 + $0x2c] sm:$0xf]
    %v297 = vld [vmem:[#allocation2 + $0x30] sm:$0xf]
    %v298 = vld [vmem:[#allocation2 + $0x34] sm:$0xf]
    %v299 = vld [vmem:[#allocation2 + $0x38] sm:$0xf]
    %v300 = vld [vmem:[#allocation2 + $0x3c] sm:$0xf]
    %v301 = vld [vmem:[%s6] sm:$0x1]
    %v303 = vperm.slane %v301, 0
    %v321 = vunpack.c.l.b16 %v285
    %v322 = vunpack.c.l.b16 %v286
    %v323 = vunpack.c.l.b16 %v287
    %v324 = vunpack.c.l.b16 %v288
    %v325 = vunpack.c.l.b16 %v289
    %v326 = vunpack.c.l.b16 %v290
    %v327 = vunpack.c.l.b16 %v291
    %v328 = vunpack.c.l.b16 %v292
    %v329 = vunpack.c.l.b16 %v293
    %v330 = vunpack.c.l.b16 %v294
    %v331 = vunpack.c.l.b16 %v295
    %v332 = vunpack.c.l.b16 %v296
    %v333 = vunpack.c.l.b16 %v297
    %v334 = vunpack.c.l.b16 %v298
    %v335 = vunpack.c.l.b16 %v299
    %v336 = vunpack.c.l.b16 %v300
    %v337 = vpack.c.b16 %v322, %v321
    %v338 = vpack.c.b16 %v324, %v323
    %v339 = vpack.c.b16 %v326, %v325
    %v340 = vpack.c.b16 %v328, %v327
    %v341 = vpack.c.b16 %v330, %v329
    %v342 = vpack.c.b16 %v332, %v331
    %v343 = vpack.c.b16 %v334, %v333
    %v344 = vpack.c.b16 %v336, %v335
    %353 = vmatpush.bf16.msra.mxu0 %v344
    %354 = vmatpush.bf16.msra.mxu0 %v343
    %355 = vmatpush.bf16.msra.mxu0 %v342
    %356 = vmatpush.bf16.msra.mxu0 %v341
    %357 = vmatpush.bf16.msra.mxu0 %v340
    %358 = vmatpush.bf16.msra.mxu0 %v339
    %359 = vmatpush.bf16.msra.mxu0 %v338
    %360 = vmatpush.bf16.msra.mxu0 %v337
    %361 = vmatmul.bf16.gmra.mxu0 %v281
    %v362 = vpop.f32.mrf.mxu0
    %v363 = vadd.f32 %v303, %v362
    %v364 = vpop.f32.mrf.mxu0
    %v365 = vadd.f32 %v303, %v364
    %366 = vmatmul.bf16.gmra.mxu0 %v282
    %v367 = vpop.f32.mrf.mxu0
    %v368 = vadd.f32 %v303, %v367
    %v369 = vpop.f32.mrf.mxu0
    %v370 = vadd.f32 %v303, %v369
    %371 = vmatmul.bf16.gmra.mxu0 %v283
    %v372 = vpop.f32.mrf.mxu0
    %v373 = vadd.f32 %v303, %v372
    %v374 = vpop.f32.mrf.mxu0
    %v375 = vadd.f32 %v303, %v374
    %376 = vmatmul.bf16.gmra.mxu0 %v284
    %v377 = vpop.f32.mrf.mxu0
    %v378 = vadd.f32 %v303, %v377
    %v379 = vpop.f32.mrf.mxu0
    %380 = vdwg.mxu0
    %381 = vst [vmem:[%s7] sm:$0xff] %v363
    %382 = vst [vmem:[%s7 + $0x8] sm:$0xff] %v365
    %383 = vst [vmem:[%s7 + $0x10] sm:$0xff] %v368
    %384 = vst [vmem:[%s7 + $0x18] sm:$0xff] %v370
    %385 = vst [vmem:[%s7 + $0x20] sm:$0xff] %v373
    %386 = vst [vmem:[%s7 + $0x28] sm:$0xff] %v375
    %387 = vst [vmem:[%s7 + $0x30] sm:$0xff] %v378
    // Predicated region
    $region34: #{_mlp_forward_impl.1} parent=1 // pred_check
      _
    $region35: #{_mlp_forward_impl.1} parent=1 // pred_check_branch
      %389 = sbr.rel (0) target = $region37
    $region36: #{_mlp_forward_impl.1} parent=1 // pred_region
      _
    $region37: #{_mlp_forward_impl.1} parent=1 // pred_fallthru
      _
    // Predicated region
    $region38: #{_mlp_forward_impl.1} parent=1 // pred_check
      _
    $region39: #{_mlp_forward_impl.1} parent=1 // pred_check_branch
      %391 = sbr.rel (0) target = $region41
    $region40: #{_mlp_forward_impl.1} parent=1 // pred_region
      _
    $region41: #{_mlp_forward_impl.1} parent=1 // pred_fallthru
      _
    %392 = vsyncpa [#allocation3], 1

// kernel: _mlp_forward_impl.1
$region0: #{_mlp_forward_impl.1}
  #allocation0 [shape = 'u32[]', space=smem, size = 0x4, offset = 0x4, fixed_abs, tag = 'smem constant byte address 0x4 - core index']
  #allocation1 [shape = 'u32[72,128]{1,0:T(1,128)}', space=vmem, size = 0x9000, scoped, tag = 'internal scratch']
  %s0 = inlined_call_operand.vmem [shape: bf16[56,128], index: 0, kind: input, shape index: {}]
  %s1 = inlined_call_operand.vmem [shape: bf16[128,128], index: 1, kind: input, shape index: {}]
  %s2 = inlined_call_operand.vmem [shape: f32[1,128], index: 2, kind: input, shape index: {}]
  %s3 = inlined_call_operand.vmem [shape: bf16[128,128], index: 3, kind: input, shape index: {}]
  %s4 = inlined_call_operand.vmem [shape: f32[1,128], index: 4, kind: input, shape index: {}]
  %s5 = inlined_call_operand.hbm [shape: bf16[128,128], index: 5, kind: input, shape index: {}]
  %s6 = inlined_call_operand.vmem [shape: f32[1,128], index: 6, kind: input, shape index: {}]
  %s7 = inlined_call_operand.vmem [shape: f32[56,128], index: 7, kind: output, shape index: {}]
  %s8 = sld [smem:[#allocation0]]
  $region42: #{_mlp_forward_impl.1} parent=0
    _
  %s10 = ssub.s32 1, %s8
  %s11 = scalar_select 0, %s10, %s8
  $region1: #{_mlp_forward_impl.1} parent=0
    #allocation2 [shape = 'u8[32768]{0}', space=vmem, size = 0x8000, scoped, tag = 'input window, operand 5, single buffered']
    #allocation3 [shape = 's32[1]{0}', space=sflag, size = 0x4, scoped, tag = 'scoped memory for _mlp_forward_impl.1']
    %12 = vsyncpa [#allocation3], 0
    // Predicated region
    $region2: #{_mlp_forward_impl.1} parent=1 // pred_check
      _
    $region3: #{_mlp_forward_impl.1} parent=1 // pred_check_branch
      %14 = sbr.rel (0) target = $region5
    $region4: #{_mlp_forward_impl.1} parent=1 // pred_region
      _
    $region5: #{_mlp_forward_impl.1} parent=1 // pred_fallthru
      _
    // Predicated region
    $region6: #{_mlp_forward_impl.1} parent=1 // pred_check
      _
    $region7: #{_mlp_forward_impl.1} parent=1 // pred_check_branch
      %16 = sbr.rel (0) target = $region9
    $region8: #{_mlp_forward_impl.1} parent=1 // pred_region
      _
    $region9: #{_mlp_forward_impl.1} parent=1 // pred_fallthru
      _
    // Predicated region
    $region10: #{_mlp_forward_impl.1} parent=1 // pred_check
      _
    $region11: #{_mlp_forward_impl.1} parent=1 // pred_check_branch
      %18 = sbr.rel (0) target = $region13
    $region12: #{_mlp_forward_impl.1} parent=1 // pred_region
      _
    $region13: #{_mlp_forward_impl.1} parent=1 // pred_fallthru
      _
    // Predicated region
    $region14: #{_mlp_forward_impl.1} parent=1 // pred_check
      _
    $region15: #{_mlp_forward_impl.1} parent=1 // pred_check_branch
      %20 = sbr.rel (0) target = $region17
    $region16: #{_mlp_forward_impl.1} parent=1 // pred_region
      _
    $region17: #{_mlp_forward_impl.1} parent=1 // pred_fallthru
      _
    // Predicated region
    $region18: #{_mlp_forward_impl.1} parent=1 // pred_check
      _
    $region19: #{_mlp_forward_impl.1} parent=1 // pred_check_branch
      %22 = sbr.rel (0) target = $region21
    $region20: #{_mlp_forward_impl.1} parent=1 // pred_region
      _
    $region21: #{_mlp_forward_impl.1} parent=1 // pred_fallthru
      _
    // Predicated region
    $region22: #{_mlp_forward_impl.1} parent=1 // pred_check
      _
    $region23: #{_mlp_forward_impl.1} parent=1 // pred_check_branch
      %24 = sbr.rel (0) target = $region25
    $region24: #{_mlp_forward_impl.1} parent=1 // pred_region
      %26 = vsyncadd [#allocation3], 0
      %s27 = sshll.u32 %s5, 4
      %s28 = int_to_ptr.hbm [resolvable:$true] %s27
      %s29 = sshll.u32 [#allocation2], 4
      %s30 = int_to_ptr.vmem [resolvable:$true] %s29
      %35 = dma.hbm_to_vmem [thread:$0]  %s28, 1024, %s30, [#allocation3], 64, 64, 4
    $region25: #{_mlp_forward_impl.1} parent=1 // pred_fallthru
      _
    // Predicated region
    $region26: #{_mlp_forward_impl.1} parent=1 // pred_check
      _
    $region27: #{_mlp_forward_impl.1} parent=1 // pred_check_branch
      %37 = sbr.rel (0) target = $region29
    $region28: #{_mlp_forward_impl.1} parent=1 // pred_region
      _
    $region29: #{_mlp_forward_impl.1} parent=1 // pred_fallthru
      _
    // Predicated region
    $region30: #{_mlp_forward_impl.1} parent=1 // pred_check
      _
    $region31: #{_mlp_forward_impl.1} parent=1 // pred_check_branch
      %39 = sbr.rel (0) target = $region33
    $region32: #{_mlp_forward_impl.1} parent=1 // pred_region
      %41 = dma.done [#allocation3], 1024
    $region33: #{_mlp_forward_impl.1} parent=1 // pred_fallthru
      _
    %v42 = vld [vmem:[%s0] sm:$0xf]
    %v43 = vld [vmem:[%s0 + $0x4] sm:$0xf]
    %v44 = vld [vmem:[%s0 + $0x8] sm:$0xf]
    %v45 = vld [vmem:[%s0 + $0xc] sm:$0xf]
    %v46 = vld [vmem:[%s0 + $0x10] sm:$0xf]
    %v47 = vld [vmem:[%s0 + $0x14] sm:$0xf]
    %v48 = vld [vmem:[%s0 + $0x18] sm:$0xf]
    %v49 = vld [vmem:[%s1] sm:$0xf]
    %v50 = vld [vmem:[%s1 + $0x4] sm:$0xf]
    %v51 = vld [vmem:[%s1 + $0x8] sm:$0xf]
    %v52 = vld [vmem:[%s1 + $0xc] sm:$0xf]
    %v53 = vld [vmem:[%s1 + $0x10] sm:$0xf]
    %v54 = vld [vmem:[%s1 + $0x14] sm:$0xf]
    %v55 = vld [vmem:[%s1 + $0x18] sm:$0xf]
    %v56 = vld [vmem:[%s1 + $0x1c] sm:$0xf]
    %v57 = vld [vmem:[%s1 + $0x20] sm:$0xf]
    %v58 = vld [vmem:[%s1 + $0x24] sm:$0xf]
    %v59 = vld [vmem:[%s1 + $0x28] sm:$0xf]
    %v60 = vld [vmem:[%s1 + $0x2c] sm:$0xf]
    %v61 = vld [vmem:[%s1 + $0x30] sm:$0xf]
    %v62 = vld [vmem:[%s1 + $0x34] sm:$0xf]
    %v63 = vld [vmem:[%s1 + $0x38] sm:$0xf]
    %v64 = vld [vmem:[%s1 + $0x3c] sm:$0xf]
    %v65 = vld [vmem:[%s2] sm:$0x1]
    %v67 = vperm.slane %v65, 0
    %v76 = vunpack.c.l.b16 %v42
    %v77 = vunpack.c.l.b16 %v43
    %v78 = vunpack.c.l.b16 %v44
    %v79 = vunpack.c.l.b16 %v45
    %v80 = vunpack.c.l.b16 %v46
    %v81 = vunpack.c.l.b16 %v47
    %v82 = vunpack.c.l.b16 %v48
    %v83 = vpack.c.b16 %v77, %v76
    %v84 = vpack.c.b16 %v79, %v78
    %v85 = vpack.c.b16 %v81, %v80
    %v86 = vpack.c.b16 %v82, %v82
    %v107 = vunpack.c.l.b16 %v49
    %v108 = vunpack.c.l.b16 %v50
    %v109 = vunpack.c.l.b16 %v51
    %v110 = vunpack.c.l.b16 %v52
    %v111 = vunpack.c.l.b16 %v53
    %v112 = vunpack.c.l.b16 %v54
    %v113 = vunpack.c.l.b16 %v55
    %v114 = vunpack.c.l.b16 %v56
    %v115 = vunpack.c.l.b16 %v57
    %v116 = vunpack.c.l.b16 %v58
    %v117 = vunpack.c.l.b16 %v59
    %v118 = vunpack.c.l.b16 %v60
    %v119 = vunpack.c.l.b16 %v61
    %v120 = vunpack.c.l.b16 %v62
    %v121 = vunpack.c.l.b16 %v63
    %v122 = vunpack.c.l.b16 %v64
    %v123 = vpack.c.b16 %v108, %v107
    %v124 = vpack.c.b16 %v110, %v109
    %v125 = vpack.c.b16 %v112, %v111
    %v126 = vpack.c.b16 %v114, %v113
    %v127 = vpack.c.b16 %v116, %v115
    %v128 = vpack.c.b16 %v118, %v117
    %v129 = vpack.c.b16 %v120, %v119
    %v130 = vpack.c.b16 %v122, %v121
    %139 = vmatpush.bf16.msra.mxu0 %v130
    %140 = vmatpush.bf16.msra.mxu0 %v129
    %141 = vmatpush.bf16.msra.mxu0 %v128
    %142 = vmatpush.bf16.msra.mxu0 %v127
    %143 = vmatpush.bf16.msra.mxu0 %v126
    %144 = vmatpush.bf16.msra.mxu0 %v125
    %145 = vmatpush.bf16.msra.mxu0 %v124
    %146 = vmatpush.bf16.msra.mxu0 %v123
    %147 = vmatmul.bf16.gmra.mxu0 %v83
    %v148 = vpop.f32.mrf.mxu0
    %v149 = vadd.f32 %v67, %v148
    %v150 = vpop.f32.mrf.mxu0
    %v151 = vadd.f32 %v67, %v150
    %152 = vmatmul.bf16.gmra.mxu0 %v84
    %v153 = vpop.f32.mrf.mxu0
    %v154 = vadd.f32 %v67, %v153
    %v155 = vpop.f32.mrf.mxu0
    %v156 = vadd.f32 %v67, %v155
    %157 = vmatmul.bf16.gmra.mxu0 %v85
    %v158 = vpop.f32.mrf.mxu0
    %v159 = vadd.f32 %v67, %v158
    %v160 = vpop.f32.mrf.mxu0
    %v161 = vadd.f32 %v67, %v160
    %162 = vmatmul.bf16.gmra.mxu0 %v86
    %v163 = vpop.f32.mrf.mxu0
    %v164 = vadd.f32 %v67, %v163
    %v165 = vpop.f32.mrf.mxu0
    %166 = vdwg.mxu0
    %v167 = vmax.f32 %v149, 0.0
    %v168 = vmax.f32 %v151, 0.0
    %v169 = vmax.f32 %v154, 0.0
    %v170 = vmax.f32 %v156, 0.0
    %v171 = vmax.f32 %v159, 0.0
    %v172 = vmax.f32 %v161, 0.0
    %v173 = vmax.f32 %v164, 0.0
    %v174 = vpack.c.bf16 %v168, %v167
    %v175 = vpack.c.bf16 %v170, %v169
    %v176 = vpack.c.bf16 %v172, %v171
    %v177 = vpack.c.bf16 %v173, %v173
    %v178 = vld [vmem:[%s3] sm:$0xf]
    %v179 = vld [vmem:[%s3 + $0x4] sm:$0xf]
    %v180 = vld [vmem:[%s3 + $0x8] sm:$0xf]
    %v181 = vld [vmem:[%s3 + $0xc] sm:$0xf]
    %v182 = vld [vmem:[%s3 + $0x10] sm:$0xf]
    %v183 = vld [vmem:[%s3 + $0x14] sm:$0xf]
    %v184 = vld [vmem:[%s3 + $0x18] sm:$0xf]
    %v185 = vld [vmem:[%s3 + $0x1c] sm:$0xf]
    %v186 = vld [vmem:[%s3 + $0x20] sm:$0xf]
    %v187 = vld [vmem:[%s3 + $0x24] sm:$0xf]
    %v188 = vld [vmem:[%s3 + $0x28] sm:$0xf]
    %v189 = vld [vmem:[%s3 + $0x2c] sm:$0xf]
    %v190 = vld [vmem:[%s3 + $0x30] sm:$0xf]
    %v191 = vld [vmem:[%s3 + $0x34] sm:$0xf]
    %v192 = vld [vmem:[%s3 + $0x38] sm:$0xf]
    %v193 = vld [vmem:[%s3 + $0x3c] sm:$0xf]
    %v194 = vld [vmem:[%s4] sm:$0x1]
    %v196 = vperm.slane %v194, 0
    %v214 = vunpack.c.l.b16 %v178
    %v215 = vunpack.c.l.b16 %v179
    %v216 = vunpack.c.l.b16 %v180
    %v217 = vunpack.c.l.b16 %v181
    %v218 = vunpack.c.l.b16 %v182
    %v219 = vunpack.c.l.b16 %v183
    %v220 = vunpack.c.l.b16 %v184
    %v221 = vunpack.c.l.b16 %v185
    %v222 = vunpack.c.l.b16 %v186
    %v223 = vunpack.c.l.b16 %v187
    %v224 = vunpack.c.l.b16 %v188
    %v225 = vunpack.c.l.b16 %v189
    %v226 = vunpack.c.l.b16 %v190
    %v227 = vunpack.c.l.b16 %v191
    %v228 = vunpack.c.l.b16 %v192
    %v229 = vunpack.c.l.b16 %v193
    %v230 = vpack.c.b16 %v215, %v214
    %v231 = vpack.c.b16 %v217, %v216
    %v232 = vpack.c.b16 %v219, %v218
    %v233 = vpack.c.b16 %v221, %v220
    %v234 = vpack.c.b16 %v223, %v222
    %v235 = vpack.c.b16 %v225, %v224
    %v236 = vpack.c.b16 %v227, %v226
    %v237 = vpack.c.b16 %v229, %v228
    %246 = vmatpush.bf16.msra.mxu0 %v237
    %247 = vmatpush.bf16.msra.mxu0 %v236
    %248 = vmatpush.bf16.msra.mxu0 %v235
    %249 = vmatpush.bf16.msra.mxu0 %v234
    %250 = vmatpush.bf16.msra.mxu0 %v233
    %251 = vmatpush.bf16.msra.mxu0 %v232
    %252 = vmatpush.bf16.msra.mxu0 %v231
    %253 = vmatpush.bf16.msra.mxu0 %v230
    %254 = vmatmul.bf16.gmra.mxu0 %v174
    %v255 = vpop.f32.mrf.mxu0
    %v256 = vadd.f32 %v196, %v255
    %v257 = vpop.f32.mrf.mxu0
    %v258 = vadd.f32 %v196, %v257
    %259 = vmatmul.bf16.gmra.mxu0 %v175
    %v260 = vpop.f32.mrf.mxu0
    %v261 = vadd.f32 %v196, %v260
    %v262 = vpop.f32.mrf.mxu0
    %v263 = vadd.f32 %v196, %v262
    %264 = vmatmul.bf16.gmra.mxu0 %v176
    %v265 = vpop.f32.mrf.mxu0
    %v266 = vadd.f32 %v196, %v265
    %v267 = vpop.f32.mrf.mxu0
    %v268 = vadd.f32 %v196, %v267
    %269 = vmatmul.bf16.gmra.mxu0 %v177
    %v270 = vpop.f32.mrf.mxu0
    %v271 = vadd.f32 %v196, %v270
    %v272 = vpop.f32.mrf.mxu0
    %273 = vdwg.mxu0
    %v274 = vmax.f32 %v256, 0.0
    %v275 = vmax.f32 %v258, 0.0
    %v276 = vmax.f32 %v261, 0.0
    %v277 = vmax.f32 %v263, 0.0
    %v278 = vmax.f32 %v266, 0.0
    %v279 = vmax.f32 %v268, 0.0
    %v280 = vmax.f32 %v271, 0.0
    %v281 = vpack.c.bf16 %v275, %v274
    %v282 = vpack.c.bf16 %v277, %v276
    %v283 = vpack.c.bf16 %v279, %v278
    %v284 = vpack.c.bf16 %v280, %v280
    %v285 = vld [vmem:[#allocation2] sm:$0xf]
    %v286 = vld [vmem:[#allocation2 + $0x4] sm:$0xf]
    %v287 = vld [vmem:[#allocation2 + $0x8] sm:$0xf]
    %v288 = vld [vmem:[#allocation2 + $0xc] sm:$0xf]
    %v289 = vld [vmem:[#allocation2 + $0x10] sm:$0xf]
    %v290 = vld [vmem:[#allocation2 + $0x14] sm:$0xf]
    %v291 = vld [vmem:[#allocation2 + $0x18] sm:$0xf]
    %v292 = vld [vmem:[#allocation2 + $0x1c] sm:$0xf]
    %v293 = vld [vmem:[#allocation2 + $0x20] sm:$0xf]
    %v294 = vld [vmem:[#allocation2 + $0x24] sm:$0xf]
    %v295 = vld [vmem:[#allocation2 + $0x28] sm:$0xf]
    %v296 = vld [vmem:[#allocation2 + $0x2c] sm:$0xf]
    %v297 = vld [vmem:[#allocation2 + $0x30] sm:$0xf]
    %v298 = vld [vmem:[#allocation2 + $0x34] sm:$0xf]
    %v299 = vld [vmem:[#allocation2 + $0x38] sm:$0xf]
    %v300 = vld [vmem:[#allocation2 + $0x3c] sm:$0xf]
    %v301 = vld [vmem:[%s6] sm:$0x1]
    %v303 = vperm.slane %v301, 0
    %v321 = vunpack.c.l.b16 %v285
    %v322 = vunpack.c.l.b16 %v286
    %v323 = vunpack.c.l.b16 %v287
    %v324 = vunpack.c.l.b16 %v288
    %v325 = vunpack.c.l.b16 %v289
    %v326 = vunpack.c.l.b16 %v290
    %v327 = vunpack.c.l.b16 %v291
    %v328 = vunpack.c.l.b16 %v292
    %v329 = vunpack.c.l.b16 %v293
    %v330 = vunpack.c.l.b16 %v294
    %v331 = vunpack.c.l.b16 %v295
    %v332 = vunpack.c.l.b16 %v296
    %v333 = vunpack.c.l.b16 %v297
    %v334 = vunpack.c.l.b16 %v298
    %v335 = vunpack.c.l.b16 %v299
    %v336 = vunpack.c.l.b16 %v300
    %v337 = vpack.c.b16 %v322, %v321
    %v338 = vpack.c.b16 %v324, %v323
    %v339 = vpack.c.b16 %v326, %v325
    %v340 = vpack.c.b16 %v328, %v327
    %v341 = vpack.c.b16 %v330, %v329
    %v342 = vpack.c.b16 %v332, %v331
    %v343 = vpack.c.b16 %v334, %v333
    %v344 = vpack.c.b16 %v336, %v335
    %353 = vmatpush.bf16.msra.mxu0 %v344
    %354 = vmatpush.bf16.msra.mxu0 %v343
    %355 = vmatpush.bf16.msra.mxu0 %v342
    %356 = vmatpush.bf16.msra.mxu0 %v341
    %357 = vmatpush.bf16.msra.mxu0 %v340
    %358 = vmatpush.bf16.msra.mxu0 %v339
    %359 = vmatpush.bf16.msra.mxu0 %v338
    %360 = vmatpush.bf16.msra.mxu0 %v337
    %361 = vmatmul.bf16.gmra.mxu0 %v281
    %v362 = vpop.f32.mrf.mxu0
    %v363 = vadd.f32 %v303, %v362
    %v364 = vpop.f32.mrf.mxu0
    %v365 = vadd.f32 %v303, %v364
    %366 = vmatmul.bf16.gmra.mxu0 %v282
    %v367 = vpop.f32.mrf.mxu0
    %v368 = vadd.f32 %v303, %v367
    %v369 = vpop.f32.mrf.mxu0
    %v370 = vadd.f32 %v303, %v369
    %371 = vmatmul.bf16.gmra.mxu0 %v283
    %v372 = vpop.f32.mrf.mxu0
    %v373 = vadd.f32 %v303, %v372
    %v374 = vpop.f32.mrf.mxu0
    %v375 = vadd.f32 %v303, %v374
    %376 = vmatmul.bf16.gmra.mxu0 %v284
    %v377 = vpop.f32.mrf.mxu0
    %v378 = vadd.f32 %v303, %v377
    %v379 = vpop.f32.mrf.mxu0
    %380 = vdwg.mxu0
    %381 = vst [vmem:[%s7] sm:$0xff] %v363
    %382 = vst [vmem:[%s7 + $0x8] sm:$0xff] %v365
    %383 = vst [vmem:[%s7 + $0x10] sm:$0xff] %v368
    %384 = vst [vmem:[%s7 + $0x18] sm:$0xff] %v370
    %385 = vst [vmem:[%s7 + $0x20] sm:$0xff] %v373
    %386 = vst [vmem:[%s7 + $0x28] sm:$0xff] %v375
    %387 = vst [vmem:[%s7 + $0x30] sm:$0xff] %v378
    // Predicated region
    $region34: #{_mlp_forward_impl.1} parent=1 // pred_check
      _
    $region35: #{_mlp_forward_impl.1} parent=1 // pred_check_branch
      %389 = sbr.rel (0) target = $region37
    $region36: #{_mlp_forward_impl.1} parent=1 // pred_region
      _
    $region37: #{_mlp_forward_impl.1} parent=1 // pred_fallthru
      _
    // Predicated region
    $region38: #{_mlp_forward_impl.1} parent=1 // pred_check
      _
    $region39: #{_mlp_forward_impl.1} parent=1 // pred_check_branch
      %391 = sbr.rel (0) target = $region41
    $region40: #{_mlp_forward_impl.1} parent=1 // pred_region
      _
    $region41: #{_mlp_forward_impl.1} parent=1 // pred_fallthru
      _
    %392 = vsyncpa [#allocation3], 1

</llo_original>
